<compile_context>
chip_gen: v6e
topology: v6e:2x2x1
jax: 0.10.0
libtpu: 0.0.40
codegen_flags: <defaults>
</compile_context>

<pallas_src>
import functools
import math

import jax
import jax.numpy as jnp
from jax.experimental import pallas as pl
from jax.experimental.pallas import tpu as pltpu


def _residual_kernel(x_ref, w1_ref, w2_ref, o_ref, *, seq_len):
    # x_ref : (Cin, BW)   lane-dense slab, BW = batch_block * L
    # w1_ref: (H, 3*Cin)  k=3 conv weights, taps flattened into the K dim
    # w2_ref: (Cout, H)   k=1 conv weights
    # o_ref : (Cout, BW)
    cin, bw = x_ref.shape

    x = x_ref[...].astype(jnp.float32)
    xr = jnp.maximum(x, 0.0)                                   # ReLU

    # Position of each lane inside its batch element; masks stop the circular
    # rolls from leaking taps across batch boundaries (and implement pad=1).
    pos = jax.lax.broadcasted_iota(jnp.int32, (cin, bw), 1) % seq_len
    first = pos == 0
    last = pos == (seq_len - 1)

    # tap0[c, l] = xr[c, l-1] (zero at l==0); tap2[c, l] = xr[c, l+1] (zero at l==L-1)
    x_m1 = jnp.where(first, 0.0, pltpu.roll(xr, shift=1, axis=1))
    x_p1 = jnp.where(last, 0.0, pltpu.roll(xr, shift=bw - 1, axis=1))

    # im2col along the contraction dim, built ONCE per grid step -> K = 3*Cin.
    stacked = jnp.concatenate([x_m1, xr, x_p1], axis=0)        # (3*Cin, BW)

    # TODO(synk): on v6e/v7x, casting matmul operands to bf16 (keeping f32
    # accumulation) is a free minor win; kept f32 here for bitwise-tight tests.
    h = jnp.dot(w1_ref[...], stacked, preferred_element_type=jnp.float32)   # (H, BW)
    h = jnp.maximum(h, 0.0)                                                 # ReLU
    y = jnp.dot(w2_ref[...], h, preferred_element_type=jnp.float32)         # (Cout, BW)

    o_ref[...] = (x + y).astype(o_ref.dtype)                                # residual add


# Target per-step INPUT block bytes.  Double-buffered in+out blocks plus the
# in-kernel f32 temporaries stay at a few MiB for typical residual-block
# channel counts -> safe on v5e's 16 MiB scoped-VMEM default.
_TARGET_IN_BLOCK_BYTES = 512 * 1024


def residual_forward(x_ncl, w1_torch, w2_torch, *, batch_block=None):
    """x_ncl: (N, Cin, L) (PyTorch NCL). w1_torch: (H, Cin, 3), w2_torch: (Cout, H, 1)."""
    N, Cin, L = x_ncl.shape
    H = w1_torch.shape[0]
    Cout = w2_torch.shape[0]
    assert Cout == Cin, "residual add requires num_hiddens == in_channels"

    itemsize = jnp.dtype(x_ncl.dtype).itemsize
    bb_unit = math.lcm(L, 128) // L          # smallest bb with (bb*L) % 128 == 0

    if batch_block is None:
        target_bw = max(128, _TARGET_IN_BLOCK_BYTES // (max(Cin, 8) * itemsize))
        batch_block = max(1, target_bw // L)
    if batch_block < N:
        # Round up so each block's lane width is a multiple of 128 (lane-dense,
        # unmasked stores).  A final full-width single block needs no rounding.
        batch_block = ((batch_block + bb_unit - 1) // bb_unit) * bb_unit
    if batch_block >= N:
        batch_block = N
        n_pad = N
    else:
        n_pad = -(-N // batch_block) * batch_block   # pad batch instead of bb=1 fallback

    grid = (n_pad // batch_block,)
    bw = batch_block * L

    # Layout plumbing (not compute): NCL -> lane-dense (Cin, N*L) slab.
    x_flat = jnp.transpose(x_ncl, (1, 0, 2)).reshape(Cin, N * L)
    if n_pad > N:
        x_flat = jnp.pad(x_flat, ((0, 0), (0, (n_pad - N) * L)))

    # Host-side weight prep (tiny, one-time):
    #   (H, Cin, 3) -> (H, 3, Cin) -> (H, 3*Cin): w1_flat[h, k*Cin + c] = W1[h, c, k]
    w1_flat = jnp.transpose(w1_torch, (0, 2, 1)).reshape(H, 3 * Cin).astype(x_ncl.dtype)
    w2 = w2_torch[:, :, 0].astype(x_ncl.dtype)                    # (Cout, H)

    flops = 2 * n_pad * L * (3 * Cin * H + H * Cout)
    bytes_accessed = (itemsize * n_pad * L * (Cin + Cout)
                      + jnp.dtype(w1_flat.dtype).itemsize * (3 * Cin * H + Cout * H))

    kernel = functools.partial(_residual_kernel, seq_len=L)

    out_flat = pl.pallas_call(
        kernel,
        out_shape=jax.ShapeDtypeStruct((Cout, n_pad * L), x_ncl.dtype),
        grid_spec=pltpu.PrefetchScalarGridSpec(
            num_scalar_prefetch=0,
            grid=grid,
            in_specs=[
                pl.BlockSpec((Cin, bw), lambda n: (0, n)),
                pl.BlockSpec((H, 3 * Cin), lambda n: (0, 0)),
                pl.BlockSpec((Cout, H), lambda n: (0, 0)),
            ],
            out_specs=pl.BlockSpec((Cout, bw), lambda n: (0, n)),
        ),
        compiler_params=pltpu.CompilerParams(
            dimension_semantics=("parallel",)),
        cost_estimate=pl.CostEstimate(
            flops=flops, transcendentals=0, bytes_accessed=int(bytes_accessed)),
    )(x_flat, w1_flat, w2)

    out = out_flat.reshape(Cout, n_pad, L).transpose(1, 0, 2)     # back to NCL
    return out[:N] if n_pad > N else out


def residual_reference(x_ncl, w1_torch, w2_torch):
    """Pure-JAX reference matching PyTorch semantics (NCL)."""
    xr = jnp.maximum(x_ncl, 0.0)
    h = jax.lax.conv_general_dilated(
        xr, w1_torch, window_strides=(1,), padding=((1, 1),),
        dimension_numbers=("NCH", "OIH", "NCH"))
    h = jnp.maximum(h, 0.0)
    y = jax.lax.conv_general_dilated(
        h, w2_torch, window_strides=(1,), padding=((0, 0),),
        dimension_numbers=("NCH", "OIH", "NCH"))
    return x_ncl + y


if __name__ == "__main__":
    # Residual(in_channels=8, num_hiddens=8, num_residual_hiddens=16), seq len 16
    N, Cin, L = 2, 8, 16
    H = 16          # num_residual_hiddens
    Cout = Cin      # num_hiddens (must equal in_channels for the residual add)

    key = jax.random.PRNGKey(0)
    kx, k1, k2 = jax.random.split(key, 3)
    x = jax.random.normal(kx, (N, Cin, L), dtype=jnp.float32)
    w1 = jax.random.normal(k1, (H, Cin, 3), dtype=jnp.float32) * 0.1   # conv k=3
    w2 = jax.random.normal(k2, (Cout, H, 1), dtype=jnp.float32) * 0.1  # conv k=1

    out = jax.block_until_ready(residual_forward(x, w1, w2))
    ref = residual_reference(x, w1, w2)
    assert out.shape == (N, Cout, L)
    assert out.dtype == x.dtype
    assert jnp.allclose(out, ref, atol=1e-5, rtol=1e-5)

    # Also exercise the multi-step grid + batch-padding path (N=20, bb=8 -> grid=3,
    # block lane width 128, 4 padded batch elements sliced off afterwards).
    N2 = 20
    x2 = jax.random.normal(jax.random.PRNGKey(1), (N2, Cin, L), dtype=jnp.float32)
    out2 = jax.block_until_ready(residual_forward(x2, w1, w2, batch_block=8))
    ref2 = residual_reference(x2, w1, w2)
    assert out2.shape == (N2, Cout, L)
    assert jnp.allclose(out2, ref2, atol=1e-5, rtol=1e-5)

    print("KERNEL_OK")
</pallas_src>

<mosaic_0001>
module attributes {stable_mosaic.version = 11 : i64} {
  func.func @_residual_kernel(%arg0: i32, %arg1: memref<8x32xf32, #tpu.memory_space<vmem>>, %arg2: memref<16x24xf32, #tpu.memory_space<vmem>>, %arg3: memref<8x16xf32, #tpu.memory_space<vmem>>, %arg4: memref<8x32xf32, #tpu.memory_space<vmem>>) attributes {dimension_semantics = [#tpu.dimension_semantics<parallel>], iteration_bounds = array<i64: 1>, scalar_prefetch = 0 : i64, scratch_operands = 0 : i64, tpu.core_type = #tpu.core_type<tc>, window_params = [{transform_indices = @transform_0, window_bounds = array<i64: 8, 32>}, {pipeline_mode = #tpu.pipeline_mode<synchronous>, transform_indices = @transform_1, window_bounds = array<i64: 16, 24>}, {pipeline_mode = #tpu.pipeline_mode<synchronous>, transform_indices = @transform_2, window_bounds = array<i64: 8, 16>}, {transform_indices = @transform_3, window_bounds = array<i64: 8, 32>}]} {
    %c0 = arith.constant 0 : index
    %c0_0 = arith.constant 0 : index
    %0 = vector.load %arg1[%c0, %c0_0] : memref<8x32xf32, #tpu.memory_space<vmem>>, vector<8x32xf32>
    %cst = arith.constant 0.000000e+00 : f32
    %1 = vector.broadcast %cst : f32 to vector<8x32xf32>
    %2 = arith.maximumf %0, %1 : vector<8x32xf32>
    %3 = tpu.iota {dimensions = array<i32: 1>} : vector<8x32xi32>
    %c16_i32 = arith.constant 16 : i32
    %c0_i32 = arith.constant 0 : i32
    %4 = arith.cmpi eq, %c16_i32, %c0_i32 : i32
    %c1_i32 = arith.constant 1 : i32
    %5 = arith.select %4, %c1_i32, %c16_i32 : i32
    %6 = vector.broadcast %5 : i32 to vector<8x32xi32>
    %7 = arith.remsi %3, %6 : vector<8x32xi32>
    %c0_i32_1 = arith.constant 0 : i32
    %8 = vector.broadcast %c0_i32_1 : i32 to vector<8x32xi32>
    %9 = arith.cmpi ne, %7, %8 : vector<8x32xi32>
    %c0_i32_2 = arith.constant 0 : i32
    %10 = vector.broadcast %c0_i32_2 : i32 to vector<8x32xi32>
    %11 = arith.cmpi slt, %7, %10 : vector<8x32xi32>
    %c0_i32_3 = arith.constant 0 : i32
    %12 = arith.cmpi slt, %5, %c0_i32_3 : i32
    %13 = vector.broadcast %12 : i1 to vector<8x32xi1>
    %14 = vector.broadcast %13 : vector<8x32xi1> to vector<8x32xi1>
    %15 = arith.xori %11, %14 : vector<8x32xi1>
    %16 = arith.andi %15, %9 : vector<8x32xi1>
    %17 = vector.broadcast %5 : i32 to vector<8x32xi32>
    %18 = arith.addi %7, %17 : vector<8x32xi32>
    %19 = arith.select %16, %18, %7 : vector<8x32xi1>, vector<8x32xi32>
    %c0_i32_4 = arith.constant 0 : i32
    %20 = vector.broadcast %c0_i32_4 : i32 to vector<8x32xi32>
    %21 = arith.cmpi eq, %19, %20 : vector<8x32xi32>
    %c15_i32 = arith.constant 15 : i32
    %22 = vector.broadcast %c15_i32 : i32 to vector<8x32xi32>
    %23 = arith.cmpi eq, %19, %22 : vector<8x32xi32>
    %c1_i32_5 = arith.constant 1 : i32
    %24 = tpu.dynamic_rotate %2 by %c1_i32_5 dim 1 : vector<8x32xf32>, i32 -> vector<8x32xf32>
    %cst_6 = arith.constant 0.000000e+00 : f32
    %25 = vector.broadcast %cst_6 : f32 to vector<8x32xf32>
    %26 = arith.select %21, %25, %24 : vector<8x32xi1>, vector<8x32xf32>
    %c31_i32 = arith.constant 31 : i32
    %27 = tpu.dynamic_rotate %2 by %c31_i32 dim 1 : vector<8x32xf32>, i32 -> vector<8x32xf32>
    %cst_7 = arith.constant 0.000000e+00 : f32
    %28 = vector.broadcast %cst_7 : f32 to vector<8x32xf32>
    %29 = arith.select %23, %28, %27 : vector<8x32xi1>, vector<8x32xf32>
    %30 = tpu.concatenate %26, %2, %29 in 0 : vector<8x32xf32>, vector<8x32xf32>, vector<8x32xf32> -> vector<24x32xf32>
    %c0_8 = arith.constant 0 : index
    %c0_9 = arith.constant 0 : index
    %31 = vector.load %arg2[%c0_8, %c0_9] : memref<16x24xf32, #tpu.memory_space<vmem>>, vector<16x24xf32>
    %cst_10 = arith.constant dense<0.000000e+00> : vector<16x32xf32>
    %32 = tpu.matmul %31, %30, %cst_10 {dimension_numbers = #tpu.dot_dimension_numbers<[1], [0], [0], [1], [0, 0, 1, 1], [], []>} : vector<16x24xf32>, vector<24x32xf32>, vector<16x32xf32> -> vector<16x32xf32>
    %cst_11 = arith.constant 0.000000e+00 : f32
    %33 = vector.broadcast %cst_11 : f32 to vector<16x32xf32>
    %34 = arith.maximumf %32, %33 : vector<16x32xf32>
    %c0_12 = arith.constant 0 : index
    %c0_13 = arith.constant 0 : index
    %35 = vector.load %arg3[%c0_12, %c0_13] : memref<8x16xf32, #tpu.memory_space<vmem>>, vector<8x16xf32>
    %cst_14 = arith.constant dense<0.000000e+00> : vector<8x32xf32>
    %36 = tpu.matmul %35, %34, %cst_14 {dimension_numbers = #tpu.dot_dimension_numbers<[1], [0], [0], [1], [0, 0, 1, 1], [], []>} : vector<8x16xf32>, vector<16x32xf32>, vector<8x32xf32> -> vector<8x32xf32>
    %37 = arith.addf %0, %36 : vector<8x32xf32>
    %c0_15 = arith.constant 0 : index
    %c0_16 = arith.constant 0 : index
    %38 = vector.load %arg4[%c0_15, %c0_16] : memref<8x32xf32, #tpu.memory_space<vmem>>, vector<8x32xf32>
    tpu.vector_store %arg4[%c0_15, %c0_16], %37 {strides = array<i32>} : memref<8x32xf32, #tpu.memory_space<vmem>>, vector<8x32xf32>,
    return
  }
  func.func @transform_0(%arg0: i32) -> (i32, i32) {
    %c0_i32 = arith.constant 0 : i32
    %c0_i32_0 = arith.constant 0 : i32
    return %c0_i32, %arg0 : i32, i32
  }
  func.func @transform_1(%arg0: i32) -> (i32, i32) {
    %c0_i32 = arith.constant 0 : i32
    %c0_i32_0 = arith.constant 0 : i32
    %c0_i32_1 = arith.constant 0 : i32
    return %c0_i32, %c0_i32_0 : i32, i32
  }
  func.func @transform_2(%arg0: i32) -> (i32, i32) {
    %c0_i32 = arith.constant 0 : i32
    %c0_i32_0 = arith.constant 0 : i32
    %c0_i32_1 = arith.constant 0 : i32
    return %c0_i32, %c0_i32_0 : i32, i32
  }
  func.func @transform_3(%arg0: i32) -> (i32, i32) {
    %c0_i32 = arith.constant 0 : i32
    %c0_i32_0 = arith.constant 0 : i32
    return %c0_i32, %arg0 : i32, i32
  }
}

</mosaic_0001>

<llo_original>
// kernel: tpu_custom_call.1
$region0: #{tpu_custom_call.1}
  #allocation0 [shape = 'u32[]', space=smem, size = 0x4, offset = 0x4, fixed_abs, tag = 'smem constant byte address 0x4 - core index']
  #allocation1 [shape = 'u32[144,128]{1,0:T(1,128)}', space=vmem, size = 0x12000, scoped, tag = 'internal scratch']
  %s0 = inlined_call_operand.hbm [shape: f32[8,32], index: 0, kind: input, shape index: {}]
  %s1 = inlined_call_operand.hbm [shape: f32[16,24], index: 1, kind: input, shape index: {}]
  %s2 = inlined_call_operand.hbm [shape: f32[8,16], index: 2, kind: input, shape index: {}]
  %s3 = inlined_call_operand.hbm [shape: f32[8,32], index: 3, kind: output, shape index: {}]
  %s4 = sld [smem:[#allocation0]]
  $region34: #{tpu_custom_call.1} parent=0
    _
  %s6 = ssub.s32 1, %s4
  %s7 = scalar_select 0, %s6, %s4
  $region1: #{tpu_custom_call.1} parent=0
    #allocation2 [shape = 'u8[4096]{0}', space=vmem, size = 0x1000, scoped, tag = 'input window, operand 0, single buffered']
    #allocation3 [shape = 's32[1]{0}', space=sflag, size = 0x4, scoped, tag = 'scoped memory for tpu_custom_call.1']
    #allocation4 [shape = 's32[1]{0}', space=sflag, size = 0x4, scoped, tag = 'scoped memory for tpu_custom_call.1']
    #allocation5 [shape = 'u8[8192]{0}', space=vmem, size = 0x2000, scoped, tag = 'input window, operand 1, single buffered']
    #allocation6 [shape = 's32[1]{0}', space=sflag, size = 0x4, scoped, tag = 'scoped memory for tpu_custom_call.1']
    #allocation7 [shape = 'u8[4096]{0}', space=vmem, size = 0x1000, scoped, tag = 'input window, operand 2, single buffered']
    #allocation8 [shape = 'u8[4096]{0}', space=vmem, size = 0x1000, scoped, tag = 'output window, operand 0, single buffered']
    %8 = vsyncpa [#allocation3], 0
    %9 = vsyncpa [#allocation6], 0
    %10 = vsyncpa [#allocation4], 0
    // Predicated region
    $region2: #{tpu_custom_call.1} parent=1 // pred_check
      _
    $region3: #{tpu_custom_call.1} parent=1 // pred_check_branch
      %12 = sbr.rel (0) target = $region5
    $region4: #{tpu_custom_call.1} parent=1 // pred_region
      %s14 = ssub.s32 128, 128
      %15 = vsyncadd [#allocation3], %s14
      %s17 = sshll.u32 [#allocation2], 4
      %s18 = int_to_ptr.vmem [resolvable:$true] %s17
      %20 = dma.hbm_to_vmem [thread:$0]  %s0, 128, %s18, [#allocation3]
    $region5: #{tpu_custom_call.1} parent=1 // pred_fallthru
      _
    // Predicated region
    $region6: #{tpu_custom_call.1} parent=1 // pred_check
      _
    $region7: #{tpu_custom_call.1} parent=1 // pred_check_branch
      %22 = sbr.rel (0) target = $region9
    $region8: #{tpu_custom_call.1} parent=1 // pred_region
      %s24 = ssub.s32 256, 256
      %25 = vsyncadd [#allocation6], %s24
      %s26 = sshll.u32 [#allocation5], 4
      %s27 = int_to_ptr.vmem [resolvable:$true] %s26
      %32 = dma.hbm_to_vmem [thread:$0]  %s1, 256, %s27, [#allocation6], 128, 128, 8
    $region9: #{tpu_custom_call.1} parent=1 // pred_fallthru
      _
    // Predicated region
    $region10: #{tpu_custom_call.1} parent=1 // pred_check
      _
    $region11: #{tpu_custom_call.1} parent=1 // pred_check_branch
      %34 = sbr.rel (0) target = $region13
    $region12: #{tpu_custom_call.1} parent=1 // pred_region
      %s36 = ssub.s32 128, 128
      %37 = vsyncadd [#allocation6], %s36
      %s39 = sshll.u32 [#allocation7], 4
      %s40 = int_to_ptr.vmem [resolvable:$true] %s39
      %42 = dma.hbm_to_vmem [thread:$0]  %s2, 128, %s40, [#allocation6]
    $region13: #{tpu_custom_call.1} parent=1 // pred_fallthru
      _
    // Predicated region
    $region14: #{tpu_custom_call.1} parent=1 // pred_check
      _
    $region15: #{tpu_custom_call.1} parent=1 // pred_check_branch
      %44 = sbr.rel (0) target = $region17
    $region16: #{tpu_custom_call.1} parent=1 // pred_region
      %45 = dma.done [#allocation3], 128
    $region17: #{tpu_custom_call.1} parent=1 // pred_fallthru
      _
    // Predicated region
    $region18: #{tpu_custom_call.1} parent=1 // pred_check
      _
    $region19: #{tpu_custom_call.1} parent=1 // pred_check_branch
      %47 = sbr.rel (0) target = $region21
    $region20: #{tpu_custom_call.1} parent=1 // pred_region
      %48 = dma.done [#allocation6], 256
    $region21: #{tpu_custom_call.1} parent=1 // pred_fallthru
      _
    // Predicated region
    $region22: #{tpu_custom_call.1} parent=1 // pred_check
      _
    $region23: #{tpu_custom_call.1} parent=1 // pred_check_branch
      %50 = sbr.rel (0) target = $region25
    $region24: #{tpu_custom_call.1} parent=1 // pred_region
      %51 = dma.done [#allocation6], 128
    $region25: #{tpu_custom_call.1} parent=1 // pred_fallthru
      _
    %v52 = vld [vmem:[#allocation2] sm:$0xff]
    %v53 = vmax.f32 %v52, 0.0
    %v54 = vlaneseq
    %v55 = vand.u32 %v54, 127
    %vm56 = vcmp.lt.s32.totalorder %v55, 0
    %v57 = vsub.s32 0, %v55
    %v58 = vsel %vm56, %v57, %v55
    %v59 = vshrl.u32 %v58, 4
    %v60 = vand.u32 %v58, 15
    %v61 = vsub.s32 0, %v60
    %v62 = vsel %vm56, %v61, %v60
    %vm63 = vcmp.ne.s32.totalorder %v62, 0
    %vm64 = vcmp.lt.s32.totalorder %v62, 0
    %vm65 = vmand %vm64, %vm63
    %v66 = vadd.s32 %v62, 16
    %v67 = vsel %vm65, %v66, %v62
    %vm68 = vcmp.eq.s32.totalorder %v67, 0
    %vm69 = vcmp.eq.s32.totalorder %v67, 15
    %vm70 = vcmask 1047808
    %71 = vrot.lane.b32.xlu0 %v53, 32
    %v72 = vpop.permute.xlu0 %71
    %v73 = vsel %vm70, %v72, %v53
    %74 = vrot.lane.b32.xlu0 %v73, 32
    %v75 = vpop.permute.xlu0 %74
    %v76 = vsel %vm70, %v75, %v53
    %78 = vrot.lane.b32.xlu0 %v76, 97
    %v79 = vpop.permute.xlu0 %78
    %v81 = vsel %vm68, 0.0, %v79
    %82 = vrot.lane.b32.xlu0 %v76, 127
    %v83 = vpop.permute.xlu0 %82
    %v85 = vsel %vm69, 0.0, %v83
    %v86 = vld [vmem:[#allocation5] sm:$0xff]
    %v87 = vld [vmem:[#allocation5 + $0x8] sm:$0xff]
    %vm88 = vcmask 195584
    %v90 = vsel %vm88, %v86, 0
    %v93 = vsel %vm88, %v87, 0
    %95 = vmatprep.subr.mxu0 0.0
    %96 = vmatpush1.msra.mxu0 0.0
    %97 = vmatprep.subr.mxu0 0.0
    %98 = vmatpush1.msra.mxu0 0.0
    %99 = vmatprep.subr.mxu0 0.0
    %100 = vmatpush1.msra.mxu0 0.0
    %101 = vmatprep.subr.mxu0 0.0
    %102 = vmatpush1.msra.mxu0 0.0
    %103 = vmatprep.subr.mxu0 0.0
    %104 = vmatpush1.msra.mxu0 0.0
    %105 = vmatprep.subr.mxu0 0.0
    %106 = vmatpush1.msra.mxu0 0.0
    %107 = vmatprep.subr.mxu0 0.0
    %108 = vmatpush1.msra.mxu0 0.0
    %109 = vmatprep.subr.mxu0 0.0
    %110 = vmatpush1.msra.mxu0 0.0
    %111 = vmatprep.subr.mxu0 0.0
    %112 = vmatpush1.msra.mxu0 0.0
    %113 = vmatprep.subr.mxu0 0.0
    %114 = vmatpush1.msra.mxu0 0.0
    %115 = vmatprep.subr.mxu0 0.0
    %116 = vmatpush1.msra.mxu0 0.0
    %117 = vmatprep.subr.mxu0 0.0
    %118 = vmatpush1.msra.mxu0 0.0
    %119 = vmatprep.subr.mxu0 0.0
    %120 = vmatpush1.msra.mxu0 0.0
    %121 = vmatprep.subr.mxu0 0.0
    %122 = vmatpush1.msra.mxu0 %v85
    %123 = vmatprep.subr.mxu0 0.0
    %124 = vmatpush1.msra.mxu0 %v53
    %125 = vmatprep.subr.mxu0 0.0
    %126 = vmatpush1.msra.mxu0 %v81
    %127 = vmatprep.subr.mxu0 0.0
    %128 = vmatpush2.msra.mxu0 0.0
    %129 = vmatprep.subr.mxu0 0.0
    %130 = vmatpush2.msra.mxu0 0.0
    %131 = vmatprep.subr.mxu0 0.0
    %132 = vmatpush2.msra.mxu0 0.0
    %133 = vmatprep.subr.mxu0 0.0
    %134 = vmatpush2.msra.mxu0 0.0
    %135 = vmatprep.subr.mxu0 0.0
    %136 = vmatpush2.msra.mxu0 0.0
    %137 = vmatprep.subr.mxu0 0.0
    %138 = vmatpush2.msra.mxu0 0.0
    %139 = vmatprep.subr.mxu0 0.0
    %140 = vmatpush2.msra.mxu0 0.0
    %141 = vmatprep.subr.mxu0 0.0
    %142 = vmatpush2.msra.mxu0 0.0
    %143 = vmatprep.subr.mxu0 0.0
    %144 = vmatpush2.msra.mxu0 0.0
    %145 = vmatprep.subr.mxu0 0.0
    %146 = vmatpush2.msra.mxu0 0.0
    %147 = vmatprep.subr.mxu0 0.0
    %148 = vmatpush2.msra.mxu0 0.0
    %149 = vmatprep.subr.mxu0 0.0
    %150 = vmatpush2.msra.mxu0 0.0
    %151 = vmatprep.subr.mxu0 0.0
    %152 = vmatpush2.msra.mxu0 0.0
    %153 = vmatprep.subr.mxu0 0.0
    %154 = vmatpush2.msra.mxu0 0.0
    %155 = vmatprep.subr.mxu0 0.0
    %156 = vmatpush2.msra.mxu0 0.0
    %157 = vmatprep.subr.mxu0 0.0
    %158 = vmatpush2.msra.mxu0 0.0
    %159 = vmatprep.mubr.f32.mxu0 0.0
    %160 = vmatmul.mubr.f32.gmra.mxu0 %v90
    %v161 = vpop.f32.mrf.mxu0
    %v162 = vadd.f32 0.0, %v161
    %v163 = vpop.f32.mrf.mxu0
    %164 = vmatprep.mubr.f32.mxu0 0.0
    %165 = vmatmul.mubr.f32.gmra.mxu0 %v93
    %v166 = vpop.f32.mrf.mxu0
    %v167 = vadd.f32 0.0, %v166
    %v168 = vpop.f32.mrf.mxu0
    %169 = vdwg.mxu0
    %v170 = vmax.f32 %v162, 0.0
    %v171 = vmax.f32 %v167, 0.0
    %v172 = vld [vmem:[#allocation7] sm:$0xff]
    %vm173 = vcmask 130048
    %v175 = vsel %vm173, %v172, 0
    %177 = vmatprep.subr.mxu0 0.0
    %178 = vmatpush1.msra.mxu0 0.0
    %179 = vmatprep.subr.mxu0 0.0
    %180 = vmatpush1.msra.mxu0 0.0
    %181 = vmatprep.subr.mxu0 0.0
    %182 = vmatpush1.msra.mxu0 0.0
    %183 = vmatprep.subr.mxu0 0.0
    %184 = vmatpush1.msra.mxu0 0.0
    %185 = vmatprep.subr.mxu0 0.0
    %186 = vmatpush1.msra.mxu0 0.0
    %187 = vmatprep.subr.mxu0 0.0
    %188 = vmatpush1.msra.mxu0 0.0
    %189 = vmatprep.subr.mxu0 0.0
    %190 = vmatpush1.msra.mxu0 0.0
    %191 = vmatprep.subr.mxu0 0.0
    %192 = vmatpush1.msra.mxu0 0.0
    %193 = vmatprep.subr.mxu0 0.0
    %194 = vmatpush1.msra.mxu0 0.0
    %195 = vmatprep.subr.mxu0 0.0
    %196 = vmatpush1.msra.mxu0 0.0
    %197 = vmatprep.subr.mxu0 0.0
    %198 = vmatpush1.msra.mxu0 0.0
    %199 = vmatprep.subr.mxu0 0.0
    %200 = vmatpush1.msra.mxu0 0.0
    %201 = vmatprep.subr.mxu0 0.0
    %202 = vmatpush1.msra.mxu0 0.0
    %203 = vmatprep.subr.mxu0 0.0
    %204 = vmatpush1.msra.mxu0 0.0
    %205 = vmatprep.subr.mxu0 0.0
    %206 = vmatpush1.msra.mxu0 %v171
    %207 = vmatprep.subr.mxu0 0.0
    %208 = vmatpush1.msra.mxu0 %v170
    %209 = vmatprep.subr.mxu0 0.0
    %210 = vmatpush2.msra.mxu0 0.0
    %211 = vmatprep.subr.mxu0 0.0
    %212 = vmatpush2.msra.mxu0 0.0
    %213 = vmatprep.subr.mxu0 0.0
    %214 = vmatpush2.msra.mxu0 0.0
    %215 = vmatprep.subr.mxu0 0.0
    %216 = vmatpush2.msra.mxu0 0.0
    %217 = vmatprep.subr.mxu0 0.0
    %218 = vmatpush2.msra.mxu0 0.0
    %219 = vmatprep.subr.mxu0 0.0
    %220 = vmatpush2.msra.mxu0 0.0
    %221 = vmatprep.subr.mxu0 0.0
    %222 = vmatpush2.msra.mxu0 0.0
    %223 = vmatprep.subr.mxu0 0.0
    %224 = vmatpush2.msra.mxu0 0.0
    %225 = vmatprep.subr.mxu0 0.0
    %226 = vmatpush2.msra.mxu0 0.0
    %227 = vmatprep.subr.mxu0 0.0
    %228 = vmatpush2.msra.mxu0 0.0
    %229 = vmatprep.subr.mxu0 0.0
    %230 = vmatpush2.msra.mxu0 0.0
    %231 = vmatprep.subr.mxu0 0.0
    %232 = vmatpush2.msra.mxu0 0.0
    %233 = vmatprep.subr.mxu0 0.0
    %234 = vmatpush2.msra.mxu0 0.0
    %235 = vmatprep.subr.mxu0 0.0
    %236 = vmatpush2.msra.mxu0 0.0
    %237 = vmatprep.subr.mxu0 0.0
    %238 = vmatpush2.msra.mxu0 0.0
    %239 = vmatprep.subr.mxu0 0.0
    %240 = vmatpush2.msra.mxu0 0.0
    %241 = vmatprep.mubr.f32.mxu0 0.0
    %242 = vmatmul.mubr.f32.gmra.mxu0 %v175
    %v243 = vpop.f32.mrf.mxu0
    %v244 = vadd.f32 0.0, %v243
    %v245 = vpop.f32.mrf.mxu0
    %246 = vdwg.mxu0
    %v247 = vadd.f32 %v52, %v244
    %vm248 = vcmask 261120
    %249 = vst.msk [vmem:[#allocation8] sm:$0xff] %vm248, %v247
    // Predicated region
    $region26: #{tpu_custom_call.1} parent=1 // pred_check
      _
    $region27: #{tpu_custom_call.1} parent=1 // pred_check_branch
      %251 = sbr.rel (0) target = $region29
    $region28: #{tpu_custom_call.1} parent=1 // pred_region
      %s253 = ssub.s32 128, 128
      %254 = vsyncadd [#allocation4], %s253
      %s256 = sshll.u32 [#allocation8], 4
      %s257 = int_to_ptr.vmem [resolvable:$true] %s256
      %259 = dma.vmem_to_hbm [thread:$0]  %s257, 128, %s3, [#allocation4]
    $region29: #{tpu_custom_call.1} parent=1 // pred_fallthru
      _
    // Predicated region
    $region30: #{tpu_custom_call.1} parent=1 // pred_check
      _
    $region31: #{tpu_custom_call.1} parent=1 // pred_check_branch
      %261 = sbr.rel (0) target = $region33
    $region32: #{tpu_custom_call.1} parent=1 // pred_region
      %262 = dma.done [#allocation4], 128
    $region33: #{tpu_custom_call.1} parent=1 // pred_fallthru
      _
    %263 = vsyncpa [#allocation3], 1
    %264 = vsyncpa [#allocation6], 1
    %265 = vsyncpa [#allocation4], 1

</llo_original>
